<compile_context>
chip_gen: v7x
topology: tpu7x:2x2x1
jax: 0.10.0
libtpu: 0.0.40
codegen_flags: <defaults>
</compile_context>

<pallas_src>
import functools

import jax
import jax.numpy as jnp
from jax import lax
from jax.experimental import pallas as pl
from jax.experimental.pallas import tpu as pltpu


def _round_up(v, m):
    return (v + m - 1) // m * m


def _cdiv(a, b):
    return (a + b - 1) // b


def _vmem_budget_bytes():
    """~75% of per-core VMEM: 48 MiB on v7x (64 MiB), 96 MiB on v5e/v6e (128 MiB)."""
    cap = 64 << 20
    try:
        cap = int(pltpu.get_tpu_info().vmem_capacity_bytes)
    except Exception:
        pass
    return (cap * 3) // 4


def _vmem_needed_bytes(tm, k_pad, e_pad, in_itemsize, out_itemsize):
    patches = 2 * tm * k_pad * in_itemsize      # double-buffered row tile (in)
    out_buf = 2 * tm * e_pad * out_itemsize     # double-buffered row tile (out)
    weight = k_pad * e_pad * in_itemsize        # single-buffered resident weight
    params = 8 * e_pad * 4                      # packed bias/gamma/beta (f32)
    temps = 5 * tm * e_pad * 4                  # f32 matmul acc + LayerNorm intermediates
    return patches + out_buf + weight + params + temps + (4 << 20)  # compiler scratch margin


def _patch_embed_kernel(p_ref, w_ref, params_ref, o_ref, *, eps, e_real):
    # Projection: (TM, K_pad) bf16 @ (K_pad, E_pad) bf16 -> f32 accumulation on the MXU.
    y = jnp.dot(p_ref[...], w_ref[...], preferred_element_type=jnp.float32)
    prm = params_ref[...]                       # (8, E_pad) f32; rows 0/1/2 = bias/gamma/beta
    y = y + prm[0:1, :]

    # LayerNorm over the *real* embed dims: padded E columns are exactly zero
    # (zero weight columns + zero bias), so summing over E_pad and dividing by
    # e_real is exact. All LN math in f32 (v5e VPU/EUP have no bf16).
    inv_e = 1.0 / float(e_real)
    mean = jnp.sum(y, axis=-1, keepdims=True) * inv_e
    mean_sq = jnp.sum(y * y, axis=-1, keepdims=True) * inv_e
    var = jnp.maximum(mean_sq - mean * mean, 0.0)   # cancellation guard before rsqrt
    y_hat = (y - mean) * lax.rsqrt(var + eps)
    # Padded E columns: gamma=beta=0 there -> 0 output (sliced away by the wrapper).
    o_ref[...] = (y_hat * prm[1:2, :] + prm[2:3, :]).astype(o_ref.dtype)


def patch_embed_forward(x, conv_w, conv_b, ln_gamma, ln_beta,
                        *, kernel_size, stride=None, padding=1, eps=1e-5,
                        tm=1024, matmul_dtype=jnp.bfloat16):
    """x: (B, C, H, W) NCHW.  Returns (y, (out_h, out_w)), y: (B, L, E)."""
    if stride is None:
        stride = kernel_size
    assert stride == kernel_size, "kernel assumes PatchEmbed default stride==kernel_size"
    B, C, H, W = x.shape
    E = conv_w.shape[0]
    k, p = kernel_size, padding
    out_h = (H + 2 * p - k) // k + 1
    out_w = (W + 2 * p - k) // k + 1
    L = out_h * out_w
    M = B * L
    K = C * k * k

    # K padded only to the bf16 sublane-packing multiple (blocks span the full K
    # extent, MXU handles ragged contraction); E padded to 128 for lane-dense stores.
    K_pad = _round_up(K, 16)
    E_pad = _round_up(E, 128)

    # ---- glue: im2col. Cast to bf16 FIRST so the single materialized patch
    # matrix is half-size; stride == kernel -> pure pad + reshape + transpose. ----
    # TODO(synk): fully fuse patch extraction into the kernel (2-axis grid over
    # batch/output-row tiles of the padded input) to remove this one HBM pass.
    x_lp = x.astype(matmul_dtype)
    x_pad = jnp.pad(x_lp, ((0, 0), (0, 0), (p, p), (p, p)))
    x_crop = x_pad[:, :, : out_h * k, : out_w * k]
    patches = x_crop.reshape(B, C, out_h, k, out_w, k)
    patches = patches.transpose(0, 2, 4, 1, 3, 5).reshape(M, K)   # (B*L, C*k*k)
    if K_pad != K:
        patches = jnp.pad(patches, ((0, 0), (0, K_pad - K)))

    # PyTorch Conv2d weight (E, C, kh, kw) -> matmul weight (K, E), bf16, padded.
    w_mat = conv_w.reshape(E, K).T.astype(matmul_dtype)
    if (K_pad, E_pad) != (K, E):
        w_mat = jnp.pad(w_mat, ((0, K_pad - K), (0, E_pad - E)))

    # Bias / gamma / beta packed into a single (8, E_pad) f32 array (rows 0..2 used)
    # so the resident params occupy one sublane tile instead of three padded refs.
    params = jnp.zeros((8, E_pad), jnp.float32)
    params = params.at[0, :E].set(conv_b.astype(jnp.float32))
    params = params.at[1, :E].set(ln_gamma.astype(jnp.float32))
    params = params.at[2, :E].set(ln_beta.astype(jnp.float32))

    # ---- row tiling: clamp TM so (a) the grid has >= 2 steps (both v7x TCs used)
    # and (b) the double-buffered tiles + residents + f32 temps fit the VMEM budget.
    in_itemsize = jnp.dtype(matmul_dtype).itemsize
    out_itemsize = jnp.dtype(x.dtype).itemsize
    budget = _vmem_budget_bytes()
    TM = max(8, min(_round_up(max(tm, 8), 8), _round_up(_cdiv(M, 2), 8)))
    while TM > 8 and _vmem_needed_bytes(TM, K_pad, E_pad, in_itemsize, out_itemsize) > budget:
        TM = max(8, _round_up(TM // 2, 8))
    grid = (_cdiv(M, TM),)   # ragged row tail handled by Pallas partial blocks

    kernel = functools.partial(_patch_embed_kernel, eps=eps, e_real=E)
    compiler_params = pltpu.CompilerParams(
        dimension_semantics=("parallel",),
        vmem_limit_bytes=int(budget))

    def _run(single_buffer_resident):
        resident = dict(pipeline_mode=pl.Buffered(1)) if single_buffer_resident else {}
        return pl.pallas_call(
            kernel,
            out_shape=jax.ShapeDtypeStruct((M, E_pad), x.dtype),
            grid=grid,
            in_specs=[
                pl.BlockSpec((TM, K_pad), lambda i: (i, 0)),                 # row tiles, pipelined
                pl.BlockSpec((K_pad, E_pad), lambda i: (0, 0), **resident),  # resident weight
                pl.BlockSpec((8, E_pad), lambda i: (0, 0), **resident),      # resident bias/gamma/beta
            ],
            out_specs=pl.BlockSpec((TM, E_pad), lambda i: (i, 0)),
            compiler_params=compiler_params,
        )(patches, w_mat, params)

    try:
        y = _run(True)
    except Exception:
        # Fallback if this jaxlib rejects pipeline_mode=pl.Buffered(1): resident
        # operands stay default double-buffered (costs one extra weight copy of VMEM).
        y = _run(False)

    if E_pad != E:
        y = y[:, :E]
    return y.reshape(B, L, E), (out_h, out_w)


def _reference(x, conv_w, conv_b, ln_gamma, ln_beta, *, kernel_size, padding, eps=1e-5):
    s = kernel_size
    y = lax.conv_general_dilated(
        x, conv_w, window_strides=(s, s),
        padding=((padding, padding), (padding, padding)),
        dimension_numbers=("NCHW", "OIHW", "NCHW"))
    y = y + conv_b[None, :, None, None]
    B, E, oh, ow = y.shape
    y = y.reshape(B, E, oh * ow).transpose(0, 2, 1)
    mean = jnp.mean(y, axis=-1, keepdims=True)
    var = jnp.mean((y - mean) ** 2, axis=-1, keepdims=True)
    y = (y - mean) * lax.rsqrt(var + eps)
    return y * ln_gamma + ln_beta, (oh, ow)


if __name__ == "__main__":
    # Small, module-consistent shapes.
    B, C, H, W = 2, 4, 16, 16
    E = 32            # embed_dims
    KS = 4            # kernel_size (stride = kernel_size)
    PAD = 1

    key = jax.random.PRNGKey(0)
    kx, kw, kb = jax.random.split(key, 3)
    x = jax.random.normal(kx, (B, C, H, W), dtype=jnp.float32)
    conv_w = jax.random.normal(kw, (E, C, KS, KS), dtype=jnp.float32) * 0.05
    conv_b = jax.random.normal(kb, (E,), dtype=jnp.float32) * 0.05
    ln_gamma = jnp.ones((E,), dtype=jnp.float32)   # LayerNorm default init
    ln_beta = jnp.zeros((E,), dtype=jnp.float32)

    y, out_size = patch_embed_forward(
        x, conv_w, conv_b, ln_gamma, ln_beta,
        kernel_size=KS, stride=None, padding=PAD)
    y = jax.block_until_ready(y)

    y_ref, out_size_ref = _reference(
        x, conv_w, conv_b, ln_gamma, ln_beta, kernel_size=KS, padding=PAD)
    assert out_size == tuple(int(v) for v in out_size_ref)
    assert y.shape == (B, out_size[0] * out_size[1], E)
    # bf16 MXU inputs (f32 accumulation + f32 LayerNorm) vs. a pure-f32 reference.
    max_err = float(jnp.max(jnp.abs(y - y_ref)))
    assert jnp.allclose(y, y_ref, atol=2e-2, rtol=2e-2), max_err

    print("KERNEL_OK")
</pallas_src>

<mosaic_0001>
module attributes {stable_mosaic.version = 11 : i64} {
  func.func @_patch_embed_kernel(%arg0: i32, %arg1: memref<16x64xbf16, #tpu.memory_space<vmem>>, %arg2: memref<64x128xbf16, #tpu.memory_space<vmem>>, %arg3: memref<8x128xf32, #tpu.memory_space<vmem>>, %arg4: memref<16x128xf32, #tpu.memory_space<vmem>>) attributes {dimension_semantics = [#tpu.dimension_semantics<parallel>], iteration_bounds = array<i64: 2>, scalar_prefetch = 0 : i64, scratch_operands = 0 : i64, tpu.core_type = #tpu.core_type<tc>, window_params = [{transform_indices = @transform_0, window_bounds = array<i64: 16, 64>}, {pipeline_mode = #tpu.pipeline_mode<synchronous>, transform_indices = @transform_1, window_bounds = array<i64: 64, 128>}, {pipeline_mode = #tpu.pipeline_mode<synchronous>, transform_indices = @transform_2, window_bounds = array<i64: 8, 128>}, {transform_indices = @transform_3, window_bounds = array<i64: 16, 128>}]} {
    %c0 = arith.constant 0 : index
    %c0_0 = arith.constant 0 : index
    %0 = vector.load %arg1[%c0, %c0_0] : memref<16x64xbf16, #tpu.memory_space<vmem>>, vector<16x64xbf16>
    %c0_1 = arith.constant 0 : index
    %c0_2 = arith.constant 0 : index
    %1 = vector.load %arg2[%c0_1, %c0_2] : memref<64x128xbf16, #tpu.memory_space<vmem>>, vector<64x128xbf16>
    %cst = arith.constant dense<0.000000e+00> : vector<16x128xf32>
    %2 = tpu.matmul %0, %1, %cst {dimension_numbers = #tpu.dot_dimension_numbers<[1], [0], [0], [1], [0, 0, 1, 1], [], []>} : vector<16x64xbf16>, vector<64x128xbf16>, vector<16x128xf32> -> vector<16x128xf32>
    %c0_3 = arith.constant 0 : index
    %c0_4 = arith.constant 0 : index
    %3 = vector.load %arg3[%c0_3, %c0_4] : memref<8x128xf32, #tpu.memory_space<vmem>>, vector<8x128xf32>
    %4 = vector.extract_strided_slice %3 {offsets = [0, 0], sizes = [1, 128], strides = [1, 1]} : vector<8x128xf32> to vector<1x128xf32>
    %5 = vector.broadcast %4 : vector<1x128xf32> to vector<16x128xf32>
    %6 = arith.addf %2, %5 : vector<16x128xf32>
    %cst_5 = arith.constant dense<0.000000e+00> : vector<16xf32>
    %7 = vector.multi_reduction <add>, %6, %cst_5 [1] : vector<16x128xf32> to vector<16xf32>
    %8 = vector.shape_cast %7 : vector<16xf32> to vector<16x1xf32>
    %cst_6 = arith.constant 3.125000e-02 : f32
    %9 = vector.broadcast %cst_6 : f32 to vector<16x1xf32>
    %10 = arith.mulf %8, %9 : vector<16x1xf32>
    %11 = arith.mulf %6, %6 : vector<16x128xf32>
    %cst_7 = arith.constant dense<0.000000e+00> : vector<16xf32>
    %12 = vector.multi_reduction <add>, %11, %cst_7 [1] : vector<16x128xf32> to vector<16xf32>
    %13 = vector.shape_cast %12 : vector<16xf32> to vector<16x1xf32>
    %cst_8 = arith.constant 3.125000e-02 : f32
    %14 = vector.broadcast %cst_8 : f32 to vector<16x1xf32>
    %15 = arith.mulf %13, %14 : vector<16x1xf32>
    %16 = arith.mulf %10, %10 : vector<16x1xf32>
    %17 = arith.subf %15, %16 : vector<16x1xf32>
    %cst_9 = arith.constant 0.000000e+00 : f32
    %18 = vector.broadcast %cst_9 : f32 to vector<16x1xf32>
    %19 = arith.maximumf %17, %18 : vector<16x1xf32>
    %20 = vector.broadcast %10 : vector<16x1xf32> to vector<16x128xf32>
    %21 = arith.subf %6, %20 : vector<16x128xf32>
    %cst_10 = arith.constant 9.99999974E-6 : f32
    %22 = vector.broadcast %cst_10 : f32 to vector<16x1xf32>
    %23 = arith.addf %19, %22 : vector<16x1xf32>
    %24 = math.rsqrt %23 : vector<16x1xf32>
    %25 = vector.broadcast %24 : vector<16x1xf32> to vector<16x128xf32>
    %26 = arith.mulf %21, %25 : vector<16x128xf32>
    %27 = vector.extract_strided_slice %3 {offsets = [1, 0], sizes = [1, 128], strides = [1, 1]} : vector<8x128xf32> to vector<1x128xf32>
    %28 = vector.broadcast %27 : vector<1x128xf32> to vector<16x128xf32>
    %29 = arith.mulf %26, %28 : vector<16x128xf32>
    %30 = vector.extract_strided_slice %3 {offsets = [2, 0], sizes = [1, 128], strides = [1, 1]} : vector<8x128xf32> to vector<1x128xf32>
    %31 = vector.broadcast %30 : vector<1x128xf32> to vector<16x128xf32>
    %32 = arith.addf %29, %31 : vector<16x128xf32>
    %c0_11 = arith.constant 0 : index
    %c0_12 = arith.constant 0 : index
    %33 = vector.load %arg4[%c0_11, %c0_12] : memref<16x128xf32, #tpu.memory_space<vmem>>, vector<16x128xf32>
    tpu.vector_store %arg4[%c0_11, %c0_12], %32 {strides = array<i32>} : memref<16x128xf32, #tpu.memory_space<vmem>>, vector<16x128xf32>,
    return
  }
  func.func @transform_0(%arg0: i32) -> (i32, i32) {
    %c0_i32 = arith.constant 0 : i32
    %c0_i32_0 = arith.constant 0 : i32
    return %arg0, %c0_i32 : i32, i32
  }
  func.func @transform_1(%arg0: i32) -> (i32, i32) {
    %c0_i32 = arith.constant 0 : i32
    %c0_i32_0 = arith.constant 0 : i32
    %c0_i32_1 = arith.constant 0 : i32
    return %c0_i32, %c0_i32_0 : i32, i32
  }
  func.func @transform_2(%arg0: i32) -> (i32, i32) {
    %c0_i32 = arith.constant 0 : i32
    %c0_i32_0 = arith.constant 0 : i32
    %c0_i32_1 = arith.constant 0 : i32
    return %c0_i32, %c0_i32_0 : i32, i32
  }
  func.func @transform_3(%arg0: i32) -> (i32, i32) {
    %c0_i32 = arith.constant 0 : i32
    %c0_i32_0 = arith.constant 0 : i32
    return %arg0, %c0_i32 : i32, i32
  }
}

module attributes {stable_mosaic.version = 11 : i64} {
  func.func @_patch_embed_kernel(%arg0: i32, %arg1: memref<16x64xbf16, #tpu.memory_space<vmem>>, %arg2: memref<64x128xbf16, #tpu.memory_space<vmem>>, %arg3: memref<8x128xf32, #tpu.memory_space<vmem>>, %arg4: memref<16x128xf32, #tpu.memory_space<vmem>>) attributes {dimension_semantics = [#tpu.dimension_semantics<parallel>], iteration_bounds = array<i64: 2>, scalar_prefetch = 0 : i64, scratch_operands = 0 : i64, tpu.core_type = #tpu.core_type<tc>, window_params = [{transform_indices = @transform_0, window_bounds = array<i64: 16, 64>}, {pipeline_mode = #tpu.pipeline_mode<synchronous>, transform_indices = @transform_1, window_bounds = array<i64: 64, 128>}, {pipeline_mode = #tpu.pipeline_mode<synchronous>, transform_indices = @transform_2, window_bounds = array<i64: 8, 128>}, {transform_indices = @transform_3, window_bounds = array<i64: 16, 128>}]} {
    %c0 = arith.constant 0 : index
    %c0_0 = arith.constant 0 : index
    %0 = vector.load %arg1[%c0, %c0_0] : memref<16x64xbf16, #tpu.memory_space<vmem>>, vector<16x64xbf16>
    %c0_1 = arith.constant 0 : index
    %c0_2 = arith.constant 0 : index
    %1 = vector.load %arg2[%c0_1, %c0_2] : memref<64x128xbf16, #tpu.memory_space<vmem>>, vector<64x128xbf16>
    %cst = arith.constant dense<0.000000e+00> : vector<16x128xf32>
    %2 = tpu.matmul %0, %1, %cst {dimension_numbers = #tpu.dot_dimension_numbers<[1], [0], [0], [1], [0, 0, 1, 1], [], []>} : vector<16x64xbf16>, vector<64x128xbf16>, vector<16x128xf32> -> vector<16x128xf32>
    %c0_3 = arith.constant 0 : index
    %c0_4 = arith.constant 0 : index
    %3 = vector.load %arg3[%c0_3, %c0_4] : memref<8x128xf32, #tpu.memory_space<vmem>>, vector<8x128xf32>
    %4 = vector.extract_strided_slice %3 {offsets = [0, 0], sizes = [1, 128], strides = [1, 1]} : vector<8x128xf32> to vector<1x128xf32>
    %5 = vector.broadcast %4 : vector<1x128xf32> to vector<16x128xf32>
    %6 = arith.addf %2, %5 : vector<16x128xf32>
    %cst_5 = arith.constant dense<0.000000e+00> : vector<16xf32>
    %7 = vector.multi_reduction <add>, %6, %cst_5 [1] : vector<16x128xf32> to vector<16xf32>
    %8 = vector.shape_cast %7 : vector<16xf32> to vector<16x1xf32>
    %cst_6 = arith.constant 3.125000e-02 : f32
    %9 = vector.broadcast %cst_6 : f32 to vector<16x1xf32>
    %10 = arith.mulf %8, %9 : vector<16x1xf32>
    %11 = arith.mulf %6, %6 : vector<16x128xf32>
    %cst_7 = arith.constant dense<0.000000e+00> : vector<16xf32>
    %12 = vector.multi_reduction <add>, %11, %cst_7 [1] : vector<16x128xf32> to vector<16xf32>
    %13 = vector.shape_cast %12 : vector<16xf32> to vector<16x1xf32>
    %cst_8 = arith.constant 3.125000e-02 : f32
    %14 = vector.broadcast %cst_8 : f32 to vector<16x1xf32>
    %15 = arith.mulf %13, %14 : vector<16x1xf32>
    %16 = arith.mulf %10, %10 : vector<16x1xf32>
    %17 = arith.subf %15, %16 : vector<16x1xf32>
    %cst_9 = arith.constant 0.000000e+00 : f32
    %18 = vector.broadcast %cst_9 : f32 to vector<16x1xf32>
    %19 = arith.maximumf %17, %18 : vector<16x1xf32>
    %20 = vector.broadcast %10 : vector<16x1xf32> to vector<16x128xf32>
    %21 = arith.subf %6, %20 : vector<16x128xf32>
    %cst_10 = arith.constant 9.99999974E-6 : f32
    %22 = vector.broadcast %cst_10 : f32 to vector<16x1xf32>
    %23 = arith.addf %19, %22 : vector<16x1xf32>
    %24 = math.rsqrt %23 : vector<16x1xf32>
    %25 = vector.broadcast %24 : vector<16x1xf32> to vector<16x128xf32>
    %26 = arith.mulf %21, %25 : vector<16x128xf32>
    %27 = vector.extract_strided_slice %3 {offsets = [1, 0], sizes = [1, 128], strides = [1, 1]} : vector<8x128xf32> to vector<1x128xf32>
    %28 = vector.broadcast %27 : vector<1x128xf32> to vector<16x128xf32>
    %29 = arith.mulf %26, %28 : vector<16x128xf32>
    %30 = vector.extract_strided_slice %3 {offsets = [2, 0], sizes = [1, 128], strides = [1, 1]} : vector<8x128xf32> to vector<1x128xf32>
    %31 = vector.broadcast %30 : vector<1x128xf32> to vector<16x128xf32>
    %32 = arith.addf %29, %31 : vector<16x128xf32>
    %c0_11 = arith.constant 0 : index
    %c0_12 = arith.constant 0 : index
    %33 = vector.load %arg4[%c0_11, %c0_12] : memref<16x128xf32, #tpu.memory_space<vmem>>, vector<16x128xf32>
    tpu.vector_store %arg4[%c0_11, %c0_12], %32 {strides = array<i32>} : memref<16x128xf32, #tpu.memory_space<vmem>>, vector<16x128xf32>,
    return
  }
  func.func @transform_0(%arg0: i32) -> (i32, i32) {
    %c0_i32 = arith.constant 0 : i32
    %c0_i32_0 = arith.constant 0 : i32
    return %arg0, %c0_i32 : i32, i32
  }
  func.func @transform_1(%arg0: i32) -> (i32, i32) {
    %c0_i32 = arith.constant 0 : i32
    %c0_i32_0 = arith.constant 0 : i32
    %c0_i32_1 = arith.constant 0 : i32
    return %c0_i32, %c0_i32_0 : i32, i32
  }
  func.func @transform_2(%arg0: i32) -> (i32, i32) {
    %c0_i32 = arith.constant 0 : i32
    %c0_i32_0 = arith.constant 0 : i32
    %c0_i32_1 = arith.constant 0 : i32
    return %c0_i32, %c0_i32_0 : i32, i32
  }
  func.func @transform_3(%arg0: i32) -> (i32, i32) {
    %c0_i32 = arith.constant 0 : i32
    %c0_i32_0 = arith.constant 0 : i32
    return %arg0, %c0_i32 : i32, i32
  }
}

</mosaic_0001>

<llo_original>
// kernel: tpu_custom_call.1
$region0: #{tpu_custom_call.1}
  #allocation0 [shape = 'u32[]', space=smem, size = 0x4, offset = 0x4, fixed_abs, tag = 'smem constant byte address 0x4 - core index']
  #allocation1 [shape = 'u32[144,128]{1,0:T(1,128)}', space=vmem, size = 0x12000, scoped, tag = 'internal scratch']
  %s0 = inlined_call_operand.hbm [shape: bf16[32,64], index: 0, kind: input, shape index: {}]
  %s1 = inlined_call_operand.hbm [shape: bf16[64,128], index: 1, kind: input, shape index: {}]
  %s2 = inlined_call_operand.hbm [shape: f32[8,128], index: 2, kind: input, shape index: {}]
  %s3 = inlined_call_operand.hbm [shape: f32[32,128], index: 3, kind: output, shape index: {}]
  %s4 = sld [smem:[#allocation0]]
  $region57: #{tpu_custom_call.1} parent=0
    _
  %s6 = ssub.s32 1, %s4
  %s7 = scalar_select 0, %s6, %s4
  $region1: #{tpu_custom_call.1} parent=0
    #allocation2 [shape = 'u8[8192]{0}', space=vmem, size = 0x2000, scoped, tag = 'input window, operand 0']
    #allocation3 [shape = 's32[2]{0}', space=sflag, size = 0x8, scoped, tag = 'scoped memory for tpu_custom_call.1']
    #allocation4 [shape = 's32[2]{0}', space=sflag, size = 0x8, scoped, tag = 'scoped memory for tpu_custom_call.1']
    #allocation5 [shape = 'u8[16384]{0}', space=vmem, size = 0x4000, scoped, tag = 'input window, operand 1, single buffered']
    #allocation6 [shape = 's32[1]{0}', space=sflag, size = 0x4, scoped, tag = 'scoped memory for tpu_custom_call.1']
    #allocation7 [shape = 'u8[4096]{0}', space=vmem, size = 0x1000, scoped, tag = 'input window, operand 2, single buffered']
    #allocation8 [shape = 'u8[16384]{0}', space=vmem, size = 0x4000, scoped, tag = 'output window, operand 0']
    %8 = vsyncpa [#allocation3], 0
    %s9 = scalar_lea.sflag [#allocation3], 1
    %10 = vsyncpa %s9, 0
    %11 = vsyncpa [#allocation6], 0
    %12 = vsyncpa [#allocation4], 0
    %s13 = scalar_lea.sflag [#allocation4], 1
    %14 = vsyncpa %s13, 0
    loop: start=0, step=1, limit=4
    $region2: #{tpu_custom_call.1} parent=1 // loop_pre_header
      _
    $region3: #{tpu_custom_call.1} parent=1 // loop_header
      %s16 = sphi 0, %s20
      %p17 = scmp.ge.s32.totalorder %s16, 4
      %s26 = sphi 0, %s28
      %s29 = sphi 0, %s26
      %s30 = sphi 0, %s29
      %s46 = sphi 0, %s30
      %s50 = sphi 0, %s50
      %s52 = sphi 0, %s50
      %s53 = sphi 0, %s52
      %s67 = sphi 0, %s53
      %s71 = sphi 0, %s71
      %s73 = sphi 0, %s71
      %s74 = sphi 0, %s73
      %s88 = sphi 0, %s74
      %s94 = sphi 0, %s96
      %s97 = sphi 0, %s94
      %s98 = sphi 0, %s97
      %s114 = sphi 0, %s98
    $region4: #{tpu_custom_call.1} parent=1 // loop_header_branch
      %19 = sbr.rel (%p17) target = $region8
    $region5: #{tpu_custom_call.1} parent=1 // loop_body
      %s21 = ssub.s32 %s16, 1
      %s22 = ssub.s32 %s16, 2
      %s23 = sadd.s32 %s16, 1
      %s24 = ssub.s32 %s16, %s23
      %p25 = scmp.eq.s32.totalorder %s24, 0
      %s27 = sadd.s32 %s26, 1
      %s28 = scalar_select %p25, %s26, %s27
      %p31 = pneg %p25
      %p32 = scmp.eq.s32.totalorder %s16, 1
      %p33 = por %p31, %p32
      %p34 = scmp.ne.s32.totalorder %s26, %s29
      %p35 = scmp.eq.s32.totalorder %s16, 0
      %p36 = por %p34, %p35
      %p37 = scmp.ne.s32.totalorder %s26, %s29
      %p38 = scmp.eq.s32.totalorder %s21, 1
      %p39 = por %p37, %p38
      %p40 = scmp.ne.s32.totalorder %s29, %s30
      %p41 = scmp.eq.s32.totalorder %s21, 0
      %p42 = por %p40, %p41
      %p43 = scmp.ne.s32.totalorder %s29, %s30
      %p44 = scmp.eq.s32.totalorder %s22, 1
      %p45 = por %p43, %p44
      %p47 = scmp.ne.s32.totalorder %s30, %s46
      %p48 = scmp.eq.s32.totalorder %s22, 0
      %p49 = por %p47, %p48
      %s51 = sadd.s32 %s50, 1
      %p54 = scmp.eq.s32.totalorder %s16, 1
      %p55 = scmp.ne.s32.totalorder %s50, %s52
      %p56 = scmp.eq.s32.totalorder %s16, 0
      %p57 = por %p55, %p56
      %p58 = scmp.ne.s32.totalorder %s50, %s52
      %p59 = scmp.eq.s32.totalorder %s21, 1
      %p60 = por %p58, %p59
      %p61 = scmp.ne.s32.totalorder %s52, %s53
      %p62 = scmp.eq.s32.totalorder %s21, 0
      %p63 = por %p61, %p62
      %p64 = scmp.ne.s32.totalorder %s52, %s53
      %p65 = scmp.eq.s32.totalorder %s22, 1
      %p66 = por %p64, %p65
      %p68 = scmp.ne.s32.totalorder %s53, %s67
      %p69 = scmp.eq.s32.totalorder %s22, 0
      %p70 = por %p68, %p69
      %s72 = sadd.s32 %s71, 1
      %p75 = scmp.eq.s32.totalorder %s16, 1
      %p76 = scmp.ne.s32.totalorder %s71, %s73
      %p77 = scmp.eq.s32.totalorder %s16, 0
      %p78 = por %p76, %p77
      %p79 = scmp.ne.s32.totalorder %s71, %s73
      %p80 = scmp.eq.s32.totalorder %s21, 1
      %p81 = por %p79, %p80
      %p82 = scmp.ne.s32.totalorder %s73, %s74
      %p83 = scmp.eq.s32.totalorder %s21, 0
      %p84 = por %p82, %p83
      %p85 = scmp.ne.s32.totalorder %s73, %s74
      %p86 = scmp.eq.s32.totalorder %s22, 1
      %p87 = por %p85, %p86
      %p89 = scmp.ne.s32.totalorder %s74, %s88
      %p90 = scmp.eq.s32.totalorder %s22, 0
      %p91 = por %p89, %p90
      %s92 = ssub.s32 %s16, %s23
      %p93 = scmp.eq.s32.totalorder %s92, 0
      %s95 = sadd.s32 %s94, 1
      %s96 = scalar_select %p93, %s94, %s95
      %p99 = pneg %p93
      %p100 = scmp.eq.s32.totalorder %s16, 1
      %p101 = por %p99, %p100
      %p102 = scmp.ne.s32.totalorder %s94, %s97
      %p103 = scmp.eq.s32.totalorder %s16, 0
      %p104 = por %p102, %p103
      %p105 = scmp.ne.s32.totalorder %s94, %s97
      %p106 = scmp.eq.s32.totalorder %s21, 1
      %p107 = por %p105, %p106
      %p108 = scmp.ne.s32.totalorder %s97, %s98
      %p109 = scmp.eq.s32.totalorder %s21, 0
      %p110 = por %p108, %p109
      %p111 = scmp.ne.s32.totalorder %s97, %s98
      %p112 = scmp.eq.s32.totalorder %s22, 1
      %p113 = por %p111, %p112
      %p115 = scmp.ne.s32.totalorder %s98, %s114
      %p116 = scmp.eq.s32.totalorder %s22, 0
      %p117 = por %p115, %p116
      %p118 = scmp.le.s32.totalorder 1, %s16
      %p119 = scmp.lt.s32.totalorder %s16, 3
      %p120 = pnand %p118, %p119
      %p121 = pneg %p120
      // Predicated region
      $region9: #{tpu_custom_call.1} parent=5 // pred_check
        _
      $region10: #{tpu_custom_call.1} parent=5 // pred_check_branch
        %123 = sbr.rel (%p120) target = $region12
      $region11: #{tpu_custom_call.1} parent=5 // pred_region
        %s124 = ssub.s32 %s16, 1
        // Predicated region
        $region13: #{tpu_custom_call.1} parent=11 // pred_check
          %p125 = pneg %p63
        $region14: #{tpu_custom_call.1} parent=11 // pred_check_branch
          %127 = sbr.rel (%p125) target = $region16
        $region15: #{tpu_custom_call.1} parent=11 // pred_region
          %s129 = ssub.s32 512, 512
          %130 = vsyncadd [#allocation6], %s129
          %s131 = sshll.u32 [#allocation5], 4
          %s132 = int_to_ptr.vmem [resolvable:$true] %s131
          %137 = dma.hbm_to_vmem [thread:$0]  %s1, 512, %s132, [#allocation6], 64, 64, 4
        $region16: #{tpu_custom_call.1} parent=11 // pred_fallthru
          _
        // Predicated region
        $region17: #{tpu_custom_call.1} parent=11 // pred_check
          %p138 = pneg %p84
        $region18: #{tpu_custom_call.1} parent=11 // pred_check_branch
          %140 = sbr.rel (%p138) target = $region20
        $region19: #{tpu_custom_call.1} parent=11 // pred_region
          %s142 = ssub.s32 128, 128
          %143 = vsyncadd [#allocation6], %s142
          %s145 = sshll.u32 [#allocation7], 4
          %s146 = int_to_ptr.vmem [resolvable:$true] %s145
          %148 = dma.hbm_to_vmem [thread:$0]  %s2, 128, %s146, [#allocation6]
        $region20: #{tpu_custom_call.1} parent=11 // pred_fallthru
          _
      $region12: #{tpu_custom_call.1} parent=5 // pred_fallthru
        _
      %p149 = scmp.lt.s32.totalorder %s16, 2
      // Predicated region
      $region21: #{tpu_custom_call.1} parent=5 // pred_check
        %p150 = pneg %p149
      $region22: #{tpu_custom_call.1} parent=5 // pred_check_branch
        %152 = sbr.rel (%p150) target = $region24
      $region23: #{tpu_custom_call.1} parent=5 // pred_region
        // Predicated region
        $region25: #{tpu_custom_call.1} parent=23 // pred_check
          %p153 = pneg %p36
        $region26: #{tpu_custom_call.1} parent=23 // pred_check_branch
          %155 = sbr.rel (%p153) target = $region28
        $region27: #{tpu_custom_call.1} parent=23 // pred_region
          %s156 = sand.u32 %s26, 1
          %s157 = scalar_lea.sflag [#allocation3], %s156
          %s158 = sand.u32 %s26, 1
          %s159 = smul.addr %s158, 8
          %s160 = scalar_lea.vmem [#allocation2], %s159
          %s161 = smul.u32 2, %s16
          %s163 = ssub.s32 128, 128
          %164 = vsyncadd %s157, %s163
          %s165 = smul.addr %s161, 64
          %s166 = scalar_lea.hbm %s0, %s165
          %s167 = sshll.u32 %s160, 4
          %s168 = int_to_ptr.vmem [resolvable:$true] %s167
          %173 = dma.hbm_to_vmem [thread:$0]  %s166, 128, %s168, %s157, 64, 64, 4
        $region28: #{tpu_custom_call.1} parent=23 // pred_fallthru
          _
      $region24: #{tpu_custom_call.1} parent=5 // pred_fallthru
        _
      %p174 = scmp.le.s32.totalorder 1, %s16
      %p175 = scmp.lt.s32.totalorder %s16, 3
      %p176 = pnand %p174, %p175
      %p177 = pneg %p176
      // Predicated region
      $region29: #{tpu_custom_call.1} parent=5 // pred_check
        _
      $region30: #{tpu_custom_call.1} parent=5 // pred_check_branch
        %179 = sbr.rel (%p176) target = $region32
      $region31: #{tpu_custom_call.1} parent=5 // pred_region
        %s180 = ssub.s32 %s16, 1
        %s181 = sand.u32 %s29, 1
        %s182 = scalar_lea.sflag [#allocation3], %s181
        %s183 = sand.u32 %s29, 1
        %s184 = smul.addr %s183, 8
        %s185 = scalar_lea.vmem [#allocation2], %s184
        // Predicated region
        $region33: #{tpu_custom_call.1} parent=31 // pred_check
          %p186 = pneg %p42
        $region34: #{tpu_custom_call.1} parent=31 // pred_check_branch
          %188 = sbr.rel (%p186) target = $region36
        $region35: #{tpu_custom_call.1} parent=31 // pred_region
          %189 = dma.done %s182, 128
        $region36: #{tpu_custom_call.1} parent=31 // pred_fallthru
          _
        // Predicated region
        $region37: #{tpu_custom_call.1} parent=31 // pred_check
          %p190 = pneg %p63
        $region38: #{tpu_custom_call.1} parent=31 // pred_check_branch
          %192 = sbr.rel (%p190) target = $region40
        $region39: #{tpu_custom_call.1} parent=31 // pred_region
          %193 = dma.done [#allocation6], 512
        $region40: #{tpu_custom_call.1} parent=31 // pred_fallthru
          _
        // Predicated region
        $region41: #{tpu_custom_call.1} parent=31 // pred_check
          %p194 = pneg %p84
        $region42: #{tpu_custom_call.1} parent=31 // pred_check_branch
          %196 = sbr.rel (%p194) target = $region44
        $region43: #{tpu_custom_call.1} parent=31 // pred_region
          %197 = dma.done [#allocation6], 128
        $region44: #{tpu_custom_call.1} parent=31 // pred_fallthru
          _
        %s198 = sand.u32 %s29, 1
        %s199 = scalar_lea.sflag [#allocation3], %s198
        %s200 = sand.u32 %s29, 1
        %s201 = smul.addr %s200, 8
        %s202 = scalar_lea.vmem [#allocation2], %s201
        %p203 = pneg %p42
        %p204 = pneg %p39
        %p205 = pneg %p63
        %p206 = pneg %p60
        %p207 = pneg %p84
        %p208 = pneg %p81
        %p209 = pneg %p110
        %p210 = pneg %p107
        %s211 = sand.u32 %s97, 1
        %s212 = scalar_lea.sflag [#allocation4], %s211
        %s213 = sand.u32 %s97, 1
        %s214 = smul.addr %s213, 16
        %s215 = scalar_lea.vmem [#allocation8], %s214
        %s216 = smul.u32 2, %s21
        %s217 = smul.u32 2, %s21
        %v219 = vld [vmem:[%s185] sm:$0xf]
        %v220 = vld [vmem:[%s185 + $0x4] sm:$0xf]
        %v221 = vld [vmem:[#allocation5] sm:$0xf]
        %v222 = vld [vmem:[#allocation5 + $0x4] sm:$0xf]
        %v223 = vld [vmem:[#allocation5 + $0x8] sm:$0xf]
        %v224 = vld [vmem:[#allocation5 + $0xc] sm:$0xf]
        %v225 = vld [vmem:[#allocation5 + $0x10] sm:$0xf]
        %v226 = vld [vmem:[#allocation5 + $0x14] sm:$0xf]
        %v227 = vld [vmem:[#allocation5 + $0x18] sm:$0xf]
        %v228 = vld [vmem:[#allocation5 + $0x1c] sm:$0xf]
        %v229 = vld [vmem:[#allocation7] sm:$0xff]
        %v230 = vlaneseq
        %v231 = vshrl.u32 %v230, 7
        %v232 = vsub.s32 0, %v231
        %v233 = vrot.slane %v229, %v232
        %v236 = vunpack.c.l.b16 %v219
        %v237 = vunpack.c.l.b16 %v220
        %v238 = vpack.c.b16 %v237, %v236
        %v247 = vunpack.c.l.b16 %v221
        %v248 = vunpack.c.l.b16 %v222
        %v249 = vunpack.c.l.b16 %v223
        %v250 = vunpack.c.l.b16 %v224
        %v251 = vunpack.c.l.b16 %v225
        %v252 = vunpack.c.l.b16 %v226
        %v253 = vunpack.c.l.b16 %v227
        %v254 = vunpack.c.l.b16 %v228
        %v255 = vpack.c.b16 %v248, %v247
        %v256 = vpack.c.b16 %v250, %v249
        %v257 = vpack.c.b16 %v252, %v251
        %v258 = vpack.c.b16 %v254, %v253
        %vm263 = vcmask 523264
        %v265 = vsel %vm263, %v238, 0
        %267 = vmatprep.subr.bf16.mxu0 0
        %268 = vmatpush1.bf16.msra.mxu0 %v255
        %269 = vmatprep.subr.bf16.mxu0 0
        %270 = vmatpush1.bf16.msra.mxu0 %v256
        %271 = vmatprep.subr.bf16.mxu0 0
        %272 = vmatpush1.bf16.msra.mxu0 %v257
        %273 = vmatprep.subr.bf16.mxu0 0
        %274 = vmatpush1.bf16.msra.mxu0 %v258
        %275 = vmatprep.subr.bf16.mxu0 0
        %276 = vmatpush1.bf16.msra.mxu0 0
        %277 = vmatprep.subr.bf16.mxu0 0
        %278 = vmatpush1.bf16.msra.mxu0 0
        %279 = vmatprep.subr.bf16.mxu0 0
        %280 = vmatpush1.bf16.msra.mxu0 0
        %281 = vmatprep.subr.bf16.mxu0 0
        %282 = vmatpush1.bf16.msra.mxu0 0
        %283 = vmatprep.subr.bf16.mxu0 0
        %284 = vmatpush1.bf16.msra.mxu0 0
        %285 = vmatprep.subr.bf16.mxu0 0
        %286 = vmatpush1.bf16.msra.mxu0 0
        %287 = vmatprep.subr.bf16.mxu0 0
        %288 = vmatpush1.bf16.msra.mxu0 0
        %289 = vmatprep.subr.bf16.mxu0 0
        %290 = vmatpush1.bf16.msra.mxu0 0
        %291 = vmatprep.subr.bf16.mxu0 0
        %292 = vmatpush1.bf16.msra.mxu0 0
        %293 = vmatprep.subr.bf16.mxu0 0
        %294 = vmatpush1.bf16.msra.mxu0 0
        %295 = vmatprep.subr.bf16.mxu0 0
        %296 = vmatpush1.bf16.msra.mxu0 0
        %297 = vmatprep.subr.bf16.mxu0 0
        %298 = vmatpush1.bf16.msra.mxu0 0
        %299 = vmatprep.mubr.bf16.mxu0 0
        %300 = vmatmul.mubr.bf16.gmra.mrb[0].mxu0 %v265
        %v301 = vpop.f32.mrb[0].mxu0
        %v302 = vadd.f32 %v233, %v301
        %v303 = vpop.f32.mrb[0].mxu0
        %v304 = vpop.f32.mrb[0].mxu0
        %v305 = vadd.f32 %v233, %v304
        %v306 = vpop.f32.mrb[0].mxu0
        %307 = vdwg.mxu0
        %308 = vadd.xlane.f32.xlu0 %v302
        %v309 = vpop.xlane.xlu0 %308
        %310 = vadd.xlane.f32.xlu0 %v305
        %v311 = vpop.xlane.xlu0 %310
        %v312 = vmul.f32 %v309, 0.03125
        %v313 = vmul.f32 %v311, 0.03125
        %v314 = vmul.f32 %v302, %v302
        %v315 = vmul.f32 %v305, %v305
        %316 = vadd.xlane.f32.xlu0 %v314
        %v317 = vpop.xlane.xlu0 %316
        %318 = vadd.xlane.f32.xlu0 %v315
        %v319 = vpop.xlane.xlu0 %318
        %v320 = vmul.f32 %v317, 0.03125
        %v321 = vmul.f32 %v319, 0.03125
        %v322 = vmul.f32 %v312, %v312
        %v323 = vmul.f32 %v313, %v313
        %v324 = vsub.f32 %v320, %v322
        %v325 = vsub.f32 %v321, %v323
        %v326 = vmax.f32 %v324, 0.0
        %v327 = vmax.f32 %v325, 0.0
        %v328 = vsub.f32 %v302, %v312
        %v329 = vsub.f32 %v305, %v313
        %v330 = vadd.f32 %v326, 1e-05
        %v331 = vadd.f32 %v327, 1e-05
        %v332 = vrsqrt.pop %v330
        %v333 = vrsqrt.pop %v331
        %v334 = vmul.f32 %v328, %v332
        %v335 = vmul.f32 %v329, %v333
        %v336 = vlaneseq
        %v337 = vshrl.u32 %v336, 7
        %v338 = vsub.s32 1, %v337
        %v339 = vrot.slane %v229, %v338
        %v340 = vmul.f32 %v334, %v339
        %v341 = vmul.f32 %v335, %v339
        %v342 = vlaneseq
        %v343 = vshrl.u32 %v342, 7
        %v344 = vsub.s32 2, %v343
        %v345 = vrot.slane %v229, %v344
        %v346 = vadd.f32 %v340, %v345
        %v347 = vadd.f32 %v341, %v345
        %348 = vst [vmem:[%s215] sm:$0xff] %v346
        %349 = vst [vmem:[%s215 + $0x8] sm:$0xff] %v347
        %s350 = sand.u32 %s97, 1
        %s351 = scalar_lea.sflag [#allocation4], %s350
        %s352 = sand.u32 %s97, 1
        %s353 = smul.addr %s352, 16
        %s354 = scalar_lea.vmem [#allocation8], %s353
        // Predicated region
        $region45: #{tpu_custom_call.1} parent=31 // pred_check
          %p355 = pneg %p107
        $region46: #{tpu_custom_call.1} parent=31 // pred_check_branch
          %357 = sbr.rel (%p355) target = $region48
        $region47: #{tpu_custom_call.1} parent=31 // pred_region
          %s358 = smul.u32 2, %s21
          %s360 = ssub.s32 256, 256
          %361 = vsyncadd %s351, %s360
          %s362 = smul.addr %s358, 128
          %s363 = scalar_lea.hbm %s3, %s362
          %s364 = sshll.u32 %s354, 4
          %s365 = int_to_ptr.vmem [resolvable:$true] %s364
          %370 = dma.vmem_to_hbm [thread:$0]  %s365, 256, %s363, %s351, 128, 128, 8
        $region48: #{tpu_custom_call.1} parent=31 // pred_fallthru
          _
      $region32: #{tpu_custom_call.1} parent=5 // pred_fallthru
        _
      %p371 = scmp.le.s32.totalorder 2, %s16
      // Predicated region
      $region49: #{tpu_custom_call.1} parent=5 // pred_check
        %p372 = pneg %p371
      $region50: #{tpu_custom_call.1} parent=5 // pred_check_branch
        %374 = sbr.rel (%p372) target = $region52
      $region51: #{tpu_custom_call.1} parent=5 // pred_region
        %s375 = ssub.s32 %s16, 2
        // Predicated region
        $region53: #{tpu_custom_call.1} parent=51 // pred_check
          %p376 = pneg %p113
        $region54: #{tpu_custom_call.1} parent=51 // pred_check_branch
          %378 = sbr.rel (%p376) target = $region56
        $region55: #{tpu_custom_call.1} parent=51 // pred_region
          %s379 = sand.u32 %s98, 1
          %s380 = scalar_lea.sflag [#allocation4], %s379
          %s381 = sand.u32 %s98, 1
          %s382 = smul.addr %s381, 16
          %s383 = scalar_lea.vmem [#allocation8], %s382
          %384 = dma.done %s380, 256
        $region56: #{tpu_custom_call.1} parent=51 // pred_fallthru
          _
      $region52: #{tpu_custom_call.1} parent=5 // pred_fallthru
        _
    $region6: #{tpu_custom_call.1} parent=1 // loop_footer
      %s20 = sadd.s32 1, %s16
    $region7: #{tpu_custom_call.1} parent=1 // loop_footer_branch
      %15 = sbr.rel target = $region3
    $region8: #{tpu_custom_call.1} parent=1 // loop_exit
      _
    %385 = vsyncpa [#allocation3], 1
    %s386 = scalar_lea.sflag [#allocation3], 1
    %387 = vsyncpa %s386, 1
    %388 = vsyncpa [#allocation6], 1
    %389 = vsyncpa [#allocation4], 1
    %s390 = scalar_lea.sflag [#allocation4], 1
    %391 = vsyncpa %s390, 1

// kernel: tpu_custom_call.1
$region0: #{tpu_custom_call.1}
  #allocation0 [shape = 'u32[]', space=smem, size = 0x4, offset = 0x4, fixed_abs, tag = 'smem constant byte address 0x4 - core index']
  #allocation1 [shape = 'u32[144,128]{1,0:T(1,128)}', space=vmem, size = 0x12000, scoped, tag = 'internal scratch']
  %s0 = inlined_call_operand.hbm [shape: bf16[32,64], index: 0, kind: input, shape index: {}]
  %s1 = inlined_call_operand.hbm [shape: bf16[64,128], index: 1, kind: input, shape index: {}]
  %s2 = inlined_call_operand.hbm [shape: f32[8,128], index: 2, kind: input, shape index: {}]
  %s3 = inlined_call_operand.hbm [shape: f32[32,128], index: 3, kind: output, shape index: {}]
  %s4 = sld [smem:[#allocation0]]
  $region57: #{tpu_custom_call.1} parent=0
    _
  %s6 = ssub.s32 1, %s4
  %s7 = scalar_select 0, %s6, %s4
  $region1: #{tpu_custom_call.1} parent=0
    #allocation2 [shape = 'u8[8192]{0}', space=vmem, size = 0x2000, scoped, tag = 'input window, operand 0']
    #allocation3 [shape = 's32[2]{0}', space=sflag, size = 0x8, scoped, tag = 'scoped memory for tpu_custom_call.1']
    #allocation4 [shape = 's32[2]{0}', space=sflag, size = 0x8, scoped, tag = 'scoped memory for tpu_custom_call.1']
    #allocation5 [shape = 'u8[16384]{0}', space=vmem, size = 0x4000, scoped, tag = 'input window, operand 1, single buffered']
    #allocation6 [shape = 's32[1]{0}', space=sflag, size = 0x4, scoped, tag = 'scoped memory for tpu_custom_call.1']
    #allocation7 [shape = 'u8[4096]{0}', space=vmem, size = 0x1000, scoped, tag = 'input window, operand 2, single buffered']
    #allocation8 [shape = 'u8[16384]{0}', space=vmem, size = 0x4000, scoped, tag = 'output window, operand 0']
    %8 = vsyncpa [#allocation3], 0
    %s9 = scalar_lea.sflag [#allocation3], 1
    %10 = vsyncpa %s9, 0
    %11 = vsyncpa [#allocation6], 0
    %12 = vsyncpa [#allocation4], 0
    %s13 = scalar_lea.sflag [#allocation4], 1
    %14 = vsyncpa %s13, 0
    loop: start=0, step=1, limit=4
    $region2: #{tpu_custom_call.1} parent=1 // loop_pre_header
      _
    $region3: #{tpu_custom_call.1} parent=1 // loop_header
      %s16 = sphi 0, %s20
      %p17 = scmp.ge.s32.totalorder %s16, 4
      %s26 = sphi 0, %s28
      %s29 = sphi 0, %s26
      %s30 = sphi 0, %s29
      %s46 = sphi 0, %s30
      %s50 = sphi 0, %s50
      %s52 = sphi 0, %s50
      %s53 = sphi 0, %s52
      %s67 = sphi 0, %s53
      %s71 = sphi 0, %s71
      %s73 = sphi 0, %s71
      %s74 = sphi 0, %s73
      %s88 = sphi 0, %s74
      %s94 = sphi 0, %s96
      %s97 = sphi 0, %s94
      %s98 = sphi 0, %s97
      %s114 = sphi 0, %s98
    $region4: #{tpu_custom_call.1} parent=1 // loop_header_branch
      %19 = sbr.rel (%p17) target = $region8
    $region5: #{tpu_custom_call.1} parent=1 // loop_body
      %s21 = ssub.s32 %s16, 1
      %s22 = ssub.s32 %s16, 2
      %s23 = sadd.s32 %s16, 1
      %s24 = ssub.s32 %s16, %s23
      %p25 = scmp.eq.s32.totalorder %s24, 0
      %s27 = sadd.s32 %s26, 1
      %s28 = scalar_select %p25, %s26, %s27
      %p31 = pneg %p25
      %p32 = scmp.eq.s32.totalorder %s16, 1
      %p33 = por %p31, %p32
      %p34 = scmp.ne.s32.totalorder %s26, %s29
      %p35 = scmp.eq.s32.totalorder %s16, 0
      %p36 = por %p34, %p35
      %p37 = scmp.ne.s32.totalorder %s26, %s29
      %p38 = scmp.eq.s32.totalorder %s21, 1
      %p39 = por %p37, %p38
      %p40 = scmp.ne.s32.totalorder %s29, %s30
      %p41 = scmp.eq.s32.totalorder %s21, 0
      %p42 = por %p40, %p41
      %p43 = scmp.ne.s32.totalorder %s29, %s30
      %p44 = scmp.eq.s32.totalorder %s22, 1
      %p45 = por %p43, %p44
      %p47 = scmp.ne.s32.totalorder %s30, %s46
      %p48 = scmp.eq.s32.totalorder %s22, 0
      %p49 = por %p47, %p48
      %s51 = sadd.s32 %s50, 1
      %p54 = scmp.eq.s32.totalorder %s16, 1
      %p55 = scmp.ne.s32.totalorder %s50, %s52
      %p56 = scmp.eq.s32.totalorder %s16, 0
      %p57 = por %p55, %p56
      %p58 = scmp.ne.s32.totalorder %s50, %s52
      %p59 = scmp.eq.s32.totalorder %s21, 1
      %p60 = por %p58, %p59
      %p61 = scmp.ne.s32.totalorder %s52, %s53
      %p62 = scmp.eq.s32.totalorder %s21, 0
      %p63 = por %p61, %p62
      %p64 = scmp.ne.s32.totalorder %s52, %s53
      %p65 = scmp.eq.s32.totalorder %s22, 1
      %p66 = por %p64, %p65
      %p68 = scmp.ne.s32.totalorder %s53, %s67
      %p69 = scmp.eq.s32.totalorder %s22, 0
      %p70 = por %p68, %p69
      %s72 = sadd.s32 %s71, 1
      %p75 = scmp.eq.s32.totalorder %s16, 1
      %p76 = scmp.ne.s32.totalorder %s71, %s73
      %p77 = scmp.eq.s32.totalorder %s16, 0
      %p78 = por %p76, %p77
      %p79 = scmp.ne.s32.totalorder %s71, %s73
      %p80 = scmp.eq.s32.totalorder %s21, 1
      %p81 = por %p79, %p80
      %p82 = scmp.ne.s32.totalorder %s73, %s74
      %p83 = scmp.eq.s32.totalorder %s21, 0
      %p84 = por %p82, %p83
      %p85 = scmp.ne.s32.totalorder %s73, %s74
      %p86 = scmp.eq.s32.totalorder %s22, 1
      %p87 = por %p85, %p86
      %p89 = scmp.ne.s32.totalorder %s74, %s88
      %p90 = scmp.eq.s32.totalorder %s22, 0
      %p91 = por %p89, %p90
      %s92 = ssub.s32 %s16, %s23
      %p93 = scmp.eq.s32.totalorder %s92, 0
      %s95 = sadd.s32 %s94, 1
      %s96 = scalar_select %p93, %s94, %s95
      %p99 = pneg %p93
      %p100 = scmp.eq.s32.totalorder %s16, 1
      %p101 = por %p99, %p100
      %p102 = scmp.ne.s32.totalorder %s94, %s97
      %p103 = scmp.eq.s32.totalorder %s16, 0
      %p104 = por %p102, %p103
      %p105 = scmp.ne.s32.totalorder %s94, %s97
      %p106 = scmp.eq.s32.totalorder %s21, 1
      %p107 = por %p105, %p106
      %p108 = scmp.ne.s32.totalorder %s97, %s98
      %p109 = scmp.eq.s32.totalorder %s21, 0
      %p110 = por %p108, %p109
      %p111 = scmp.ne.s32.totalorder %s97, %s98
      %p112 = scmp.eq.s32.totalorder %s22, 1
      %p113 = por %p111, %p112
      %p115 = scmp.ne.s32.totalorder %s98, %s114
      %p116 = scmp.eq.s32.totalorder %s22, 0
      %p117 = por %p115, %p116
      %p118 = scmp.le.s32.totalorder 1, %s16
      %p119 = scmp.lt.s32.totalorder %s16, 3
      %p120 = pnand %p118, %p119
      %p121 = pneg %p120
      // Predicated region
      $region9: #{tpu_custom_call.1} parent=5 // pred_check
        _
      $region10: #{tpu_custom_call.1} parent=5 // pred_check_branch
        %123 = sbr.rel (%p120) target = $region12
      $region11: #{tpu_custom_call.1} parent=5 // pred_region
        %s124 = ssub.s32 %s16, 1
        // Predicated region
        $region13: #{tpu_custom_call.1} parent=11 // pred_check
          %p125 = pneg %p63
        $region14: #{tpu_custom_call.1} parent=11 // pred_check_branch
          %127 = sbr.rel (%p125) target = $region16
        $region15: #{tpu_custom_call.1} parent=11 // pred_region
          %s129 = ssub.s32 512, 512
          %130 = vsyncadd [#allocation6], %s129
          %s131 = sshll.u32 [#allocation5], 4
          %s132 = int_to_ptr.vmem [resolvable:$true] %s131
          %137 = dma.hbm_to_vmem [thread:$0]  %s1, 512, %s132, [#allocation6], 64, 64, 4
        $region16: #{tpu_custom_call.1} parent=11 // pred_fallthru
          _
        // Predicated region
        $region17: #{tpu_custom_call.1} parent=11 // pred_check
          %p138 = pneg %p84
        $region18: #{tpu_custom_call.1} parent=11 // pred_check_branch
          %140 = sbr.rel (%p138) target = $region20
        $region19: #{tpu_custom_call.1} parent=11 // pred_region
          %s142 = ssub.s32 128, 128
          %143 = vsyncadd [#allocation6], %s142
          %s145 = sshll.u32 [#allocation7], 4
          %s146 = int_to_ptr.vmem [resolvable:$true] %s145
          %148 = dma.hbm_to_vmem [thread:$0]  %s2, 128, %s146, [#allocation6]
        $region20: #{tpu_custom_call.1} parent=11 // pred_fallthru
          _
      $region12: #{tpu_custom_call.1} parent=5 // pred_fallthru
        _
      %p149 = scmp.lt.s32.totalorder %s16, 2
      // Predicated region
      $region21: #{tpu_custom_call.1} parent=5 // pred_check
        %p150 = pneg %p149
      $region22: #{tpu_custom_call.1} parent=5 // pred_check_branch
        %152 = sbr.rel (%p150) target = $region24
      $region23: #{tpu_custom_call.1} parent=5 // pred_region
        // Predicated region
        $region25: #{tpu_custom_call.1} parent=23 // pred_check
          %p153 = pneg %p36
        $region26: #{tpu_custom_call.1} parent=23 // pred_check_branch
          %155 = sbr.rel (%p153) target = $region28
        $region27: #{tpu_custom_call.1} parent=23 // pred_region
          %s156 = sand.u32 %s26, 1
          %s157 = scalar_lea.sflag [#allocation3], %s156
          %s158 = sand.u32 %s26, 1
          %s159 = smul.addr %s158, 8
          %s160 = scalar_lea.vmem [#allocation2], %s159
          %s161 = smul.u32 2, %s16
          %s163 = ssub.s32 128, 128
          %164 = vsyncadd %s157, %s163
          %s165 = smul.addr %s161, 64
          %s166 = scalar_lea.hbm %s0, %s165
          %s167 = sshll.u32 %s160, 4
          %s168 = int_to_ptr.vmem [resolvable:$true] %s167
          %173 = dma.hbm_to_vmem [thread:$0]  %s166, 128, %s168, %s157, 64, 64, 4
        $region28: #{tpu_custom_call.1} parent=23 // pred_fallthru
          _
      $region24: #{tpu_custom_call.1} parent=5 // pred_fallthru
        _
      %p174 = scmp.le.s32.totalorder 1, %s16
      %p175 = scmp.lt.s32.totalorder %s16, 3
      %p176 = pnand %p174, %p175
      %p177 = pneg %p176
      // Predicated region
      $region29: #{tpu_custom_call.1} parent=5 // pred_check
        _
      $region30: #{tpu_custom_call.1} parent=5 // pred_check_branch
        %179 = sbr.rel (%p176) target = $region32
      $region31: #{tpu_custom_call.1} parent=5 // pred_region
        %s180 = ssub.s32 %s16, 1
        %s181 = sand.u32 %s29, 1
        %s182 = scalar_lea.sflag [#allocation3], %s181
        %s183 = sand.u32 %s29, 1
        %s184 = smul.addr %s183, 8
        %s185 = scalar_lea.vmem [#allocation2], %s184
        // Predicated region
        $region33: #{tpu_custom_call.1} parent=31 // pred_check
          %p186 = pneg %p42
        $region34: #{tpu_custom_call.1} parent=31 // pred_check_branch
          %188 = sbr.rel (%p186) target = $region36
        $region35: #{tpu_custom_call.1} parent=31 // pred_region
          %189 = dma.done %s182, 128
        $region36: #{tpu_custom_call.1} parent=31 // pred_fallthru
          _
        // Predicated region
        $region37: #{tpu_custom_call.1} parent=31 // pred_check
          %p190 = pneg %p63
        $region38: #{tpu_custom_call.1} parent=31 // pred_check_branch
          %192 = sbr.rel (%p190) target = $region40
        $region39: #{tpu_custom_call.1} parent=31 // pred_region
          %193 = dma.done [#allocation6], 512
        $region40: #{tpu_custom_call.1} parent=31 // pred_fallthru
          _
        // Predicated region
        $region41: #{tpu_custom_call.1} parent=31 // pred_check
          %p194 = pneg %p84
        $region42: #{tpu_custom_call.1} parent=31 // pred_check_branch
          %196 = sbr.rel (%p194) target = $region44
        $region43: #{tpu_custom_call.1} parent=31 // pred_region
          %197 = dma.done [#allocation6], 128
        $region44: #{tpu_custom_call.1} parent=31 // pred_fallthru
          _
        %s198 = sand.u32 %s29, 1
        %s199 = scalar_lea.sflag [#allocation3], %s198
        %s200 = sand.u32 %s29, 1
        %s201 = smul.addr %s200, 8
        %s202 = scalar_lea.vmem [#allocation2], %s201
        %p203 = pneg %p42
        %p204 = pneg %p39
        %p205 = pneg %p63
        %p206 = pneg %p60
        %p207 = pneg %p84
        %p208 = pneg %p81
        %p209 = pneg %p110
        %p210 = pneg %p107
        %s211 = sand.u32 %s97, 1
        %s212 = scalar_lea.sflag [#allocation4], %s211
        %s213 = sand.u32 %s97, 1
        %s214 = smul.addr %s213, 16
        %s215 = scalar_lea.vmem [#allocation8], %s214
        %s216 = smul.u32 2, %s21
        %s217 = smul.u32 2, %s21
        %v219 = vld [vmem:[%s185] sm:$0xf]
        %v220 = vld [vmem:[%s185 + $0x4] sm:$0xf]
        %v221 = vld [vmem:[#allocation5] sm:$0xf]
        %v222 = vld [vmem:[#allocation5 + $0x4] sm:$0xf]
        %v223 = vld [vmem:[#allocation5 + $0x8] sm:$0xf]
        %v224 = vld [vmem:[#allocation5 + $0xc] sm:$0xf]
        %v225 = vld [vmem:[#allocation5 + $0x10] sm:$0xf]
        %v226 = vld [vmem:[#allocation5 + $0x14] sm:$0xf]
        %v227 = vld [vmem:[#allocation5 + $0x18] sm:$0xf]
        %v228 = vld [vmem:[#allocation5 + $0x1c] sm:$0xf]
        %v229 = vld [vmem:[#allocation7] sm:$0xff]
        %v230 = vlaneseq
        %v231 = vshrl.u32 %v230, 7
        %v232 = vsub.s32 0, %v231
        %v233 = vrot.slane %v229, %v232
        %v236 = vunpack.c.l.b16 %v219
        %v237 = vunpack.c.l.b16 %v220
        %v238 = vpack.c.b16 %v237, %v236
        %v247 = vunpack.c.l.b16 %v221
        %v248 = vunpack.c.l.b16 %v222
        %v249 = vunpack.c.l.b16 %v223
        %v250 = vunpack.c.l.b16 %v224
        %v251 = vunpack.c.l.b16 %v225
        %v252 = vunpack.c.l.b16 %v226
        %v253 = vunpack.c.l.b16 %v227
        %v254 = vunpack.c.l.b16 %v228
        %v255 = vpack.c.b16 %v248, %v247
        %v256 = vpack.c.b16 %v250, %v249
        %v257 = vpack.c.b16 %v252, %v251
        %v258 = vpack.c.b16 %v254, %v253
        %vm263 = vcmask 523264
        %v265 = vsel %vm263, %v238, 0
        %267 = vmatprep.subr.bf16.mxu0 0
        %268 = vmatpush1.bf16.msra.mxu0 %v255
        %269 = vmatprep.subr.bf16.mxu0 0
        %270 = vmatpush1.bf16.msra.mxu0 %v256
        %271 = vmatprep.subr.bf16.mxu0 0
        %272 = vmatpush1.bf16.msra.mxu0 %v257
        %273 = vmatprep.subr.bf16.mxu0 0
        %274 = vmatpush1.bf16.msra.mxu0 %v258
        %275 = vmatprep.subr.bf16.mxu0 0
        %276 = vmatpush1.bf16.msra.mxu0 0
        %277 = vmatprep.subr.bf16.mxu0 0
        %278 = vmatpush1.bf16.msra.mxu0 0
        %279 = vmatprep.subr.bf16.mxu0 0
        %280 = vmatpush1.bf16.msra.mxu0 0
        %281 = vmatprep.subr.bf16.mxu0 0
        %282 = vmatpush1.bf16.msra.mxu0 0
        %283 = vmatprep.subr.bf16.mxu0 0
        %284 = vmatpush1.bf16.msra.mxu0 0
        %285 = vmatprep.subr.bf16.mxu0 0
        %286 = vmatpush1.bf16.msra.mxu0 0
        %287 = vmatprep.subr.bf16.mxu0 0
        %288 = vmatpush1.bf16.msra.mxu0 0
        %289 = vmatprep.subr.bf16.mxu0 0
        %290 = vmatpush1.bf16.msra.mxu0 0
        %291 = vmatprep.subr.bf16.mxu0 0
        %292 = vmatpush1.bf16.msra.mxu0 0
        %293 = vmatprep.subr.bf16.mxu0 0
        %294 = vmatpush1.bf16.msra.mxu0 0
        %295 = vmatprep.subr.bf16.mxu0 0
        %296 = vmatpush1.bf16.msra.mxu0 0
        %297 = vmatprep.subr.bf16.mxu0 0
        %298 = vmatpush1.bf16.msra.mxu0 0
        %299 = vmatprep.mubr.bf16.mxu0 0
        %300 = vmatmul.mubr.bf16.gmra.mrb[0].mxu0 %v265
        %v301 = vpop.f32.mrb[0].mxu0
        %v302 = vadd.f32 %v233, %v301
        %v303 = vpop.f32.mrb[0].mxu0
        %v304 = vpop.f32.mrb[0].mxu0
        %v305 = vadd.f32 %v233, %v304
        %v306 = vpop.f32.mrb[0].mxu0
        %307 = vdwg.mxu0
        %308 = vadd.xlane.f32.xlu0 %v302
        %v309 = vpop.xlane.xlu0 %308
        %310 = vadd.xlane.f32.xlu0 %v305
        %v311 = vpop.xlane.xlu0 %310
        %v312 = vmul.f32 %v309, 0.03125
        %v313 = vmul.f32 %v311, 0.03125
        %v314 = vmul.f32 %v302, %v302
        %v315 = vmul.f32 %v305, %v305
        %316 = vadd.xlane.f32.xlu0 %v314
        %v317 = vpop.xlane.xlu0 %316
        %318 = vadd.xlane.f32.xlu0 %v315
        %v319 = vpop.xlane.xlu0 %318
        %v320 = vmul.f32 %v317, 0.03125
        %v321 = vmul.f32 %v319, 0.03125
        %v322 = vmul.f32 %v312, %v312
        %v323 = vmul.f32 %v313, %v313
        %v324 = vsub.f32 %v320, %v322
        %v325 = vsub.f32 %v321, %v323
        %v326 = vmax.f32 %v324, 0.0
        %v327 = vmax.f32 %v325, 0.0
        %v328 = vsub.f32 %v302, %v312
        %v329 = vsub.f32 %v305, %v313
        %v330 = vadd.f32 %v326, 1e-05
        %v331 = vadd.f32 %v327, 1e-05
        %v332 = vrsqrt.pop %v330
        %v333 = vrsqrt.pop %v331
        %v334 = vmul.f32 %v328, %v332
        %v335 = vmul.f32 %v329, %v333
        %v336 = vlaneseq
        %v337 = vshrl.u32 %v336, 7
        %v338 = vsub.s32 1, %v337
        %v339 = vrot.slane %v229, %v338
        %v340 = vmul.f32 %v334, %v339
        %v341 = vmul.f32 %v335, %v339
        %v342 = vlaneseq
        %v343 = vshrl.u32 %v342, 7
        %v344 = vsub.s32 2, %v343
        %v345 = vrot.slane %v229, %v344
        %v346 = vadd.f32 %v340, %v345
        %v347 = vadd.f32 %v341, %v345
        %348 = vst [vmem:[%s215] sm:$0xff] %v346
        %349 = vst [vmem:[%s215 + $0x8] sm:$0xff] %v347
        %s350 = sand.u32 %s97, 1
        %s351 = scalar_lea.sflag [#allocation4], %s350
        %s352 = sand.u32 %s97, 1
        %s353 = smul.addr %s352, 16
        %s354 = scalar_lea.vmem [#allocation8], %s353
        // Predicated region
        $region45: #{tpu_custom_call.1} parent=31 // pred_check
          %p355 = pneg %p107
        $region46: #{tpu_custom_call.1} parent=31 // pred_check_branch
          %357 = sbr.rel (%p355) target = $region48
        $region47: #{tpu_custom_call.1} parent=31 // pred_region
          %s358 = smul.u32 2, %s21
          %s360 = ssub.s32 256, 256
          %361 = vsyncadd %s351, %s360
          %s362 = smul.addr %s358, 128
          %s363 = scalar_lea.hbm %s3, %s362
          %s364 = sshll.u32 %s354, 4
          %s365 = int_to_ptr.vmem [resolvable:$true] %s364
          %370 = dma.vmem_to_hbm [thread:$0]  %s365, 256, %s363, %s351, 128, 128, 8
        $region48: #{tpu_custom_call.1} parent=31 // pred_fallthru
          _
      $region32: #{tpu_custom_call.1} parent=5 // pred_fallthru
        _
      %p371 = scmp.le.s32.totalorder 2, %s16
      // Predicated region
      $region49: #{tpu_custom_call.1} parent=5 // pred_check
        %p372 = pneg %p371
      $region50: #{tpu_custom_call.1} parent=5 // pred_check_branch
        %374 = sbr.rel (%p372) target = $region52
      $region51: #{tpu_custom_call.1} parent=5 // pred_region
        %s375 = ssub.s32 %s16, 2
        // Predicated region
        $region53: #{tpu_custom_call.1} parent=51 // pred_check
          %p376 = pneg %p113
        $region54: #{tpu_custom_call.1} parent=51 // pred_check_branch
          %378 = sbr.rel (%p376) target = $region56
        $region55: #{tpu_custom_call.1} parent=51 // pred_region
          %s379 = sand.u32 %s98, 1
          %s380 = scalar_lea.sflag [#allocation4], %s379
          %s381 = sand.u32 %s98, 1
          %s382 = smul.addr %s381, 16
          %s383 = scalar_lea.vmem [#allocation8], %s382
          %384 = dma.done %s380, 256
        $region56: #{tpu_custom_call.1} parent=51 // pred_fallthru
          _
      $region52: #{tpu_custom_call.1} parent=5 // pred_fallthru
        _
    $region6: #{tpu_custom_call.1} parent=1 // loop_footer
      %s20 = sadd.s32 1, %s16
    $region7: #{tpu_custom_call.1} parent=1 // loop_footer_branch
      %15 = sbr.rel target = $region3
    $region8: #{tpu_custom_call.1} parent=1 // loop_exit
      _
    %385 = vsyncpa [#allocation3], 1
    %s386 = scalar_lea.sflag [#allocation3], 1
    %387 = vsyncpa %s386, 1
    %388 = vsyncpa [#allocation6], 1
    %389 = vsyncpa [#allocation4], 1
    %s390 = scalar_lea.sflag [#allocation4], 1
    %391 = vsyncpa %s390, 1

</llo_original>
